<compile_context>
chip_gen: v5e
topology: v5e:2x2
jax: 0.10.0
libtpu: 0.0.40
codegen_flags: <defaults>
</compile_context>

<pallas_src>
import functools

import jax
import jax.numpy as jnp
import numpy as np
from jax.experimental import pallas as pl
from jax.experimental.pallas import tpu as pltpu


def _round_up(a, b):
    return ((a + b - 1) // b) * b


def _lstm_decoder_kernel(x_ref, h0_ref, c0_ref,
                         wih_ref, whh_ref, b_ref,
                         w1_ref, b1_ref, w2_ref, b2_ref,
                         out_ref):
    """Fused step: LSTM cell (seq_len=1) + Linear -> LeakyReLU -> Linear decoder.

    x_ref, h0_ref: (TN, L)  bf16
    c0_ref:        (TN, L)  f32
    wih_ref/whh_ref: (L, 4L) bf16, gate columns reordered to [i, f, o, g]
    b_ref:         (1, 4L)  f32   = b_ih + b_hh, same reorder
    w1/b1:         decoder layer 1, output padded to Z=128 cols: (L, Z) bf16 / (1, Z) f32
    w2/b2:         decoder layer 2, padded: (Z, Y) bf16 / (1, Y) f32
    out_ref:       (TN, 2L + Y) f32 packed [h_n | c_n | y] single lane-dense store
    """
    L = c0_ref.shape[-1]

    # Two accumulating MXU pushes (K = L each); on v7x the MRB accumulates in place.
    gates = (jnp.dot(x_ref[...], wih_ref[...], preferred_element_type=jnp.float32)
             + jnp.dot(h0_ref[...], whh_ref[...], preferred_element_type=jnp.float32)
             + b_ref[...])                                                   # (TN, 4L) f32

    # Gate order [i, f, o, g]: one contiguous sigmoid pass + one tanh pass (2 EUP passes).
    sig = jax.nn.sigmoid(gates[:, :3 * L])                                   # (TN, 3L)
    g_g = jnp.tanh(gates[:, 3 * L:])                                         # (TN, L)
    i_g = sig[:, 0 * L:1 * L]
    f_g = sig[:, 1 * L:2 * L]
    o_g = sig[:, 2 * L:3 * L]

    c_n = f_g * c0_ref[...] + i_g * g_g
    h_n = o_g * jnp.tanh(c_n)

    # MLP decoder: Linear(L, Z-padded) -> LeakyReLU(0.01) -> Linear(Z, Y-padded).
    z = jnp.dot(h_n.astype(w1_ref.dtype), w1_ref[...],
                preferred_element_type=jnp.float32) + b1_ref[...]            # (TN, Z)
    z = jnp.where(z > 0, z, jnp.float32(0.01) * z)
    y = jnp.dot(z.astype(w2_ref.dtype), w2_ref[...],
                preferred_element_type=jnp.float32) + b2_ref[...]            # (TN, Y)

    # Single unmasked lane-dense store of [h_n | c_n | y].
    out_ref[...] = jnp.concatenate([h_n, c_n, y], axis=-1)


def prepare_params(params, latent_dim, out_node_features):
    """One-time weight preparation.  Call ONCE and reuse the result across forward calls."""
    L = latent_dim
    out_f = out_node_features

    # Reorder PyTorch gate blocks [i, f, g, o] -> [i, f, o, g] (leading dim is 4L).
    def reorder(w):
        return jnp.concatenate([w[:2 * L], w[3 * L:4 * L], w[2 * L:3 * L]], axis=0)

    wih_t = reorder(params["w_ih"]).T.astype(jnp.bfloat16)                    # (L, 4L)
    whh_t = reorder(params["w_hh"]).T.astype(jnp.bfloat16)                    # (L, 4L)
    b_lstm = (reorder(params["b_ih"]) + reorder(params["b_hh"])
              ).reshape(1, 4 * L).astype(jnp.float32)

    z_cols = _round_up(max(L, 128), 128)            # lane-dense decoder intermediate
    pack_w = _round_up(2 * L + out_f, 128)          # packed output block width
    y_cols = pack_w - 2 * L                         # lanes reserved for y in the packed block

    # Decoder layer 1: (L, L) stored (in, out) -> pad output cols to z_cols.
    w1 = jnp.pad(params["w_dec1"], ((0, 0), (0, z_cols - L))).astype(jnp.bfloat16)
    b1 = jnp.pad(params["b_dec1"], (0, z_cols - L)).reshape(1, z_cols).astype(jnp.float32)
    # Decoder layer 2: (L, out_f) -> pad K rows to z_cols (zeros) and cols to y_cols.
    w2 = jnp.pad(params["w_dec2"],
                 ((0, z_cols - L), (0, y_cols - out_f))).astype(jnp.bfloat16)
    b2 = jnp.pad(params["b_dec2"], (0, y_cols - out_f)).reshape(1, y_cols).astype(jnp.float32)

    return {
        "wih_t": wih_t, "whh_t": whh_t, "b_lstm": b_lstm,
        "w1": w1, "b1": b1, "w2": w2, "b2": b2,
    }


def lstm_homo_gnn_forward(node_features, h_0, c_0, prep, *, out_f,
                          small_block_rows=256, max_tile_rows=1024):
    """node_features: (N, L) latent node features (post GNN base).
       h_0, c_0: (1, N, L) as in PyTorch nn.LSTM.  prep: output of prepare_params().
       Returns (node_out (N, 1, out_f), h_n (1, N, L), c_n (1, N, L))."""
    N, L = node_features.shape
    wih_t, whh_t, b_lstm = prep["wih_t"], prep["whh_t"], prep["b_lstm"]
    w1, b1, w2, b2 = prep["w1"], prep["b1"], prep["w2"], prep["b2"]
    z_cols = w1.shape[1]
    y_cols = w2.shape[1]
    pack_w = 2 * L + y_cols

    h0 = h_0.reshape(N, L)
    c0 = c_0.reshape(N, L)

    # ---- tiling: one block when small; for large N use big tiles (amortize per-step
    # overhead on v5e/v6e) while keeping >= 2 grid steps (both v7x TensorCores busy).
    if N <= small_block_rows:
        tile_n = _round_up(max(N, 8), 8)
        n_pad = tile_n
    else:
        tile_n = min(max_tile_rows, _round_up(pl.cdiv(N, 2), 8))
        n_pad = _round_up(N, tile_n)

    # ---- per-call activation prep (only casts + optional row padding).
    x = node_features.astype(jnp.bfloat16)
    h0b = h0.astype(jnp.bfloat16)
    c0f = c0.astype(jnp.float32)
    if n_pad > N:
        pad = ((0, n_pad - N), (0, 0))
        x = jnp.pad(x, pad)
        h0b = jnp.pad(h0b, pad)
        c0f = jnp.pad(c0f, pad)

    grid = (n_pad // tile_n,)
    row_l = pl.BlockSpec((tile_n, L), lambda i: (i, 0))
    row_pack = pl.BlockSpec((tile_n, pack_w), lambda i: (i, 0))
    full = lambda shape: pl.BlockSpec(shape, lambda i: (0, 0))

    # Advisory cost estimate for the surrounding XLA schedule.
    mac = 2 * L * 4 * L + L * z_cols + z_cols * y_cols
    flops = 2 * n_pad * mac
    transcendentals = n_pad * 5 * L
    bytes_accessed = (n_pad * (2 * 2 * L * 2 + 4 * L) + n_pad * pack_w * 4
                      + 2 * mac + 4 * (4 * L + z_cols + y_cols))

    packed = pl.pallas_call(
        _lstm_decoder_kernel,
        out_shape=jax.ShapeDtypeStruct((n_pad, pack_w), jnp.float32),
        grid_spec=pltpu.PrefetchScalarGridSpec(
            num_scalar_prefetch=0,
            grid=grid,
            in_specs=[
                row_l,                           # x
                row_l,                           # h0
                row_l,                           # c0
                full((L, 4 * L)),                # W_ih^T (reordered)
                full((L, 4 * L)),                # W_hh^T (reordered)
                full((1, 4 * L)),                # fused LSTM bias
                full((L, z_cols)),               # W_dec1 (lane-padded out cols)
                full((1, z_cols)),               # b_dec1
                full((z_cols, y_cols)),          # W_dec2 (K-rows + cols padded)
                full((1, y_cols)),               # b_dec2
            ],
            out_specs=row_pack,                  # packed [h_n | c_n | y] lane-dense block
        ),
        compiler_params=pltpu.CompilerParams(
            dimension_semantics=("parallel",)),
        cost_estimate=pl.CostEstimate(flops=int(flops),
                                      transcendentals=int(transcendentals),
                                      bytes_accessed=int(bytes_accessed)),
    )(x, h0b, c0f, wih_t, whh_t, b_lstm, w1, b1, w2, b2)

    # Unpack, drop row padding, match PyTorch conventions:
    #   decoder output (N, 1, out_f); h_n / c_n are (num_layers=1, N, L).
    h_n = packed[:N, 0:L].reshape(1, N, L)
    c_n = packed[:N, L:2 * L].reshape(1, N, L)
    y = packed[:N, 2 * L:2 * L + out_f].reshape(N, 1, out_f)
    return y, h_n, c_n


def init_params(key, latent_dim, out_node_features):
    """Deterministic synthetic parameter init (PyTorch-style uniform(-1/sqrt(L), 1/sqrt(L)))."""
    L = latent_dim
    ks = jax.random.split(key, 8)
    s = 1.0 / jnp.sqrt(jnp.float32(L))
    u = lambda k, shape: jax.random.uniform(k, shape, jnp.float32, -s, s)
    return {
        "w_ih": u(ks[0], (4 * L, L)),          # PyTorch weight_ih_l0, gate order [i,f,g,o]
        "w_hh": u(ks[1], (4 * L, L)),          # PyTorch weight_hh_l0
        "b_ih": u(ks[2], (4 * L,)),
        "b_hh": u(ks[3], (4 * L,)),
        "w_dec1": u(ks[4], (L, L)),            # stored as (in, out)
        "b_dec1": u(ks[5], (L,)),
        "w_dec2": u(ks[6], (L, out_node_features)),
        "b_dec2": u(ks[7], (out_node_features,)),
    }


def _reference_forward(x, h_0, c_0, params):
    """Pure-JAX f32 reference of the LSTM cell + MLP decoder (PyTorch semantics)."""
    N, L = x.shape
    h0 = h_0.reshape(N, L)
    c0 = c_0.reshape(N, L)
    gates = (x @ params["w_ih"].T + h0 @ params["w_hh"].T
             + params["b_ih"] + params["b_hh"])
    i = jax.nn.sigmoid(gates[:, 0 * L:1 * L])
    f = jax.nn.sigmoid(gates[:, 1 * L:2 * L])
    g = jnp.tanh(gates[:, 2 * L:3 * L])
    o = jax.nn.sigmoid(gates[:, 3 * L:4 * L])
    c_n = f * c0 + i * g
    h_n = o * jnp.tanh(c_n)
    z = h_n @ params["w_dec1"] + params["b_dec1"]
    z = jnp.where(z > 0, z, 0.01 * z)
    y = z @ params["w_dec2"] + params["b_dec2"]
    return y.reshape(N, 1, -1), h_n.reshape(1, N, L), c_n.reshape(1, N, L)


if __name__ == "__main__":
    N = 16                 # number of graph nodes (flattened "batch" for the LSTM)
    LATENT = 32            # network_config.latent_dimension
    OUT_NODE_FEATURES = 3  # e.g. predicted velocity dims

    key = jax.random.PRNGKey(0)
    k_x, k_h, k_c, k_p = jax.random.split(key, 4)

    # Latent node features (what GNNBase + predict_velocity would produce).
    node_features = jax.random.normal(k_x, (N, LATENT), jnp.float32)
    h_0 = jax.random.normal(k_h, (1, N, LATENT), jnp.float32)
    c_0 = jax.random.normal(k_c, (1, N, LATENT), jnp.float32)
    params = init_params(k_p, LATENT, OUT_NODE_FEATURES)

    # One-time weight prep, reused across all forward calls (kept outside jit on purpose).
    prep = prepare_params(params, LATENT, OUT_NODE_FEATURES)
    prep = jax.block_until_ready(prep)

    fwd = jax.jit(functools.partial(lstm_homo_gnn_forward, out_f=OUT_NODE_FEATURES))
    y, h_n, c_n = fwd(node_features, h_0, c_0, prep)
    jax.block_until_ready((y, h_n, c_n))

    assert y.shape == (N, 1, OUT_NODE_FEATURES)
    assert h_n.shape == (1, N, LATENT)
    assert c_n.shape == (1, N, LATENT)

    # Numerical check vs. pure-JAX f32 reference (kernel uses bf16 MXU operands).
    y_r, h_r, c_r = _reference_forward(node_features, h_0, c_0, params)
    np.testing.assert_allclose(np.asarray(y), np.asarray(y_r), rtol=2e-2, atol=2e-2)
    np.testing.assert_allclose(np.asarray(h_n), np.asarray(h_r), rtol=2e-2, atol=2e-2)
    np.testing.assert_allclose(np.asarray(c_n), np.asarray(c_r), rtol=2e-2, atol=2e-2)

    print("KERNEL_OK")
</pallas_src>

<mosaic_0001>
module attributes {stable_mosaic.version = 11 : i64} {
  func.func @_lstm_decoder_kernel(%arg0: i32, %arg1: memref<16x32xbf16, #tpu.memory_space<vmem>>, %arg2: memref<16x32xbf16, #tpu.memory_space<vmem>>, %arg3: memref<16x32xf32, #tpu.memory_space<vmem>>, %arg4: memref<32x128xbf16, #tpu.memory_space<vmem>>, %arg5: memref<32x128xbf16, #tpu.memory_space<vmem>>, %arg6: memref<1x128xf32, #tpu.memory_space<vmem>>, %arg7: memref<32x128xbf16, #tpu.memory_space<vmem>>, %arg8: memref<1x128xf32, #tpu.memory_space<vmem>>, %arg9: memref<128x64xbf16, #tpu.memory_space<vmem>>, %arg10: memref<1x64xf32, #tpu.memory_space<vmem>>, %arg11: memref<16x128xf32, #tpu.memory_space<vmem>>) attributes {dimension_semantics = [#tpu.dimension_semantics<parallel>], iteration_bounds = array<i64: 1>, scalar_prefetch = 0 : i64, scratch_operands = 0 : i64, tpu.core_type = #tpu.core_type<tc>, window_params = [{transform_indices = @transform_0, window_bounds = array<i64: 16, 32>}, {transform_indices = @transform_1, window_bounds = array<i64: 16, 32>}, {transform_indices = @transform_2, window_bounds = array<i64: 16, 32>}, {pipeline_mode = #tpu.pipeline_mode<synchronous>, transform_indices = @transform_3, window_bounds = array<i64: 32, 128>}, {pipeline_mode = #tpu.pipeline_mode<synchronous>, transform_indices = @transform_4, window_bounds = array<i64: 32, 128>}, {pipeline_mode = #tpu.pipeline_mode<synchronous>, transform_indices = @transform_5, window_bounds = array<i64: 1, 128>}, {pipeline_mode = #tpu.pipeline_mode<synchronous>, transform_indices = @transform_6, window_bounds = array<i64: 32, 128>}, {pipeline_mode = #tpu.pipeline_mode<synchronous>, transform_indices = @transform_7, window_bounds = array<i64: 1, 128>}, {pipeline_mode = #tpu.pipeline_mode<synchronous>, transform_indices = @transform_8, window_bounds = array<i64: 128, 64>}, {pipeline_mode = #tpu.pipeline_mode<synchronous>, transform_indices = @transform_9, window_bounds = array<i64: 1, 64>}, {transform_indices = @transform_10, window_bounds = array<i64: 16, 128>}]} {
    %c0 = arith.constant 0 : index
    %c0_0 = arith.constant 0 : index
    %0 = vector.load %arg1[%c0, %c0_0] : memref<16x32xbf16, #tpu.memory_space<vmem>>, vector<16x32xbf16>
    %c0_1 = arith.constant 0 : index
    %c0_2 = arith.constant 0 : index
    %1 = vector.load %arg4[%c0_1, %c0_2] : memref<32x128xbf16, #tpu.memory_space<vmem>>, vector<32x128xbf16>
    %cst = arith.constant dense<0.000000e+00> : vector<16x128xf32>
    %2 = tpu.matmul %0, %1, %cst {dimension_numbers = #tpu.dot_dimension_numbers<[1], [0], [0], [1], [0, 0, 1, 1], [], []>} : vector<16x32xbf16>, vector<32x128xbf16>, vector<16x128xf32> -> vector<16x128xf32>
    %c0_3 = arith.constant 0 : index
    %c0_4 = arith.constant 0 : index
    %3 = vector.load %arg2[%c0_3, %c0_4] : memref<16x32xbf16, #tpu.memory_space<vmem>>, vector<16x32xbf16>
    %c0_5 = arith.constant 0 : index
    %c0_6 = arith.constant 0 : index
    %4 = vector.load %arg5[%c0_5, %c0_6] : memref<32x128xbf16, #tpu.memory_space<vmem>>, vector<32x128xbf16>
    %cst_7 = arith.constant dense<0.000000e+00> : vector<16x128xf32>
    %5 = tpu.matmul %3, %4, %cst_7 {dimension_numbers = #tpu.dot_dimension_numbers<[1], [0], [0], [1], [0, 0, 1, 1], [], []>} : vector<16x32xbf16>, vector<32x128xbf16>, vector<16x128xf32> -> vector<16x128xf32>
    %6 = arith.addf %2, %5 : vector<16x128xf32>
    %c0_8 = arith.constant 0 : index
    %c0_9 = arith.constant 0 : index
    %7 = vector.load %arg6[%c0_8, %c0_9] : memref<1x128xf32, #tpu.memory_space<vmem>>, vector<1x128xf32>
    %8 = vector.broadcast %7 : vector<1x128xf32> to vector<16x128xf32>
    %9 = arith.addf %6, %8 : vector<16x128xf32>
    %10 = vector.extract_strided_slice %9 {offsets = [0, 0], sizes = [16, 96], strides = [1, 1]} : vector<16x128xf32> to vector<16x96xf32>
    %11 = arith.negf %10 : vector<16x96xf32>
    %12 = math.exp %11 : vector<16x96xf32>
    %cst_10 = arith.constant 1.000000e+00 : f32
    %13 = vector.broadcast %cst_10 : f32 to vector<16x96xf32>
    %14 = arith.addf %13, %12 : vector<16x96xf32>
    %15 = arith.divf %13, %14 : vector<16x96xf32>
    %16 = vector.extract_strided_slice %9 {offsets = [0, 96], sizes = [16, 32], strides = [1, 1]} : vector<16x128xf32> to vector<16x32xf32>
    %17 = math.tanh %16 : vector<16x32xf32>
    %18 = vector.extract_strided_slice %15 {offsets = [0, 0], sizes = [16, 32], strides = [1, 1]} : vector<16x96xf32> to vector<16x32xf32>
    %19 = vector.extract_strided_slice %15 {offsets = [0, 32], sizes = [16, 32], strides = [1, 1]} : vector<16x96xf32> to vector<16x32xf32>
    %20 = vector.extract_strided_slice %15 {offsets = [0, 64], sizes = [16, 32], strides = [1, 1]} : vector<16x96xf32> to vector<16x32xf32>
    %c0_11 = arith.constant 0 : index
    %c0_12 = arith.constant 0 : index
    %21 = vector.load %arg3[%c0_11, %c0_12] : memref<16x32xf32, #tpu.memory_space<vmem>>, vector<16x32xf32>
    %22 = arith.mulf %19, %21 : vector<16x32xf32>
    %23 = arith.mulf %18, %17 : vector<16x32xf32>
    %24 = arith.addf %22, %23 : vector<16x32xf32>
    %25 = math.tanh %24 : vector<16x32xf32>
    %26 = arith.mulf %20, %25 : vector<16x32xf32>
    %27 = arith.truncf %26 : vector<16x32xf32> to vector<16x32xbf16>
    %c0_13 = arith.constant 0 : index
    %c0_14 = arith.constant 0 : index
    %28 = vector.load %arg7[%c0_13, %c0_14] : memref<32x128xbf16, #tpu.memory_space<vmem>>, vector<32x128xbf16>
    %cst_15 = arith.constant dense<0.000000e+00> : vector<16x128xf32>
    %29 = tpu.matmul %27, %28, %cst_15 {dimension_numbers = #tpu.dot_dimension_numbers<[1], [0], [0], [1], [0, 0, 1, 1], [], []>} : vector<16x32xbf16>, vector<32x128xbf16>, vector<16x128xf32> -> vector<16x128xf32>
    %c0_16 = arith.constant 0 : index
    %c0_17 = arith.constant 0 : index
    %30 = vector.load %arg8[%c0_16, %c0_17] : memref<1x128xf32, #tpu.memory_space<vmem>>, vector<1x128xf32>
    %31 = vector.broadcast %30 : vector<1x128xf32> to vector<16x128xf32>
    %32 = arith.addf %29, %31 : vector<16x128xf32>
    %cst_18 = arith.constant 0.000000e+00 : f32
    %33 = vector.broadcast %cst_18 : f32 to vector<16x128xf32>
    %34 = arith.cmpf ogt, %32, %33 : vector<16x128xf32>
    %cst_19 = arith.constant 0.00999999977 : f32
    %35 = vector.broadcast %cst_19 : f32 to vector<16x128xf32>
    %36 = arith.mulf %35, %32 : vector<16x128xf32>
    %37 = arith.select %34, %32, %36 : vector<16x128xi1>, vector<16x128xf32>
    %38 = arith.truncf %37 : vector<16x128xf32> to vector<16x128xbf16>
    %c0_20 = arith.constant 0 : index
    %c0_21 = arith.constant 0 : index
    %39 = vector.load %arg9[%c0_20, %c0_21] : memref<128x64xbf16, #tpu.memory_space<vmem>>, vector<128x64xbf16>
    %cst_22 = arith.constant dense<0.000000e+00> : vector<16x64xf32>
    %40 = tpu.matmul %38, %39, %cst_22 {dimension_numbers = #tpu.dot_dimension_numbers<[1], [0], [0], [1], [0, 0, 1, 1], [], []>} : vector<16x128xbf16>, vector<128x64xbf16>, vector<16x64xf32> -> vector<16x64xf32>
    %c0_23 = arith.constant 0 : index
    %c0_24 = arith.constant 0 : index
    %41 = vector.load %arg10[%c0_23, %c0_24] : memref<1x64xf32, #tpu.memory_space<vmem>>, vector<1x64xf32>
    %42 = vector.broadcast %41 : vector<1x64xf32> to vector<16x64xf32>
    %43 = arith.addf %40, %42 : vector<16x64xf32>
    %44 = tpu.concatenate %26, %24, %43 in 1 : vector<16x32xf32>, vector<16x32xf32>, vector<16x64xf32> -> vector<16x128xf32>
    %c0_25 = arith.constant 0 : index
    %c0_26 = arith.constant 0 : index
    %45 = vector.load %arg11[%c0_25, %c0_26] : memref<16x128xf32, #tpu.memory_space<vmem>>, vector<16x128xf32>
    tpu.vector_store %arg11[%c0_25, %c0_26], %44 {strides = array<i32>} : memref<16x128xf32, #tpu.memory_space<vmem>>, vector<16x128xf32>,
    return
  }
  func.func @transform_0(%arg0: i32) -> (i32, i32) {
    %c0_i32 = arith.constant 0 : i32
    %c0_i32_0 = arith.constant 0 : i32
    return %arg0, %c0_i32 : i32, i32
  }
  func.func @transform_1(%arg0: i32) -> (i32, i32) {
    %c0_i32 = arith.constant 0 : i32
    %c0_i32_0 = arith.constant 0 : i32
    return %arg0, %c0_i32 : i32, i32
  }
  func.func @transform_2(%arg0: i32) -> (i32, i32) {
    %c0_i32 = arith.constant 0 : i32
    %c0_i32_0 = arith.constant 0 : i32
    return %arg0, %c0_i32 : i32, i32
  }
  func.func @transform_3(%arg0: i32) -> (i32, i32) {
    %c0_i32 = arith.constant 0 : i32
    %c0_i32_0 = arith.constant 0 : i32
    %c0_i32_1 = arith.constant 0 : i32
    return %c0_i32, %c0_i32_0 : i32, i32
  }
  func.func @transform_4(%arg0: i32) -> (i32, i32) {
    %c0_i32 = arith.constant 0 : i32
    %c0_i32_0 = arith.constant 0 : i32
    %c0_i32_1 = arith.constant 0 : i32
    return %c0_i32, %c0_i32_0 : i32, i32
  }
  func.func @transform_5(%arg0: i32) -> (i32, i32) {
    %c0_i32 = arith.constant 0 : i32
    %c0_i32_0 = arith.constant 0 : i32
    %c0_i32_1 = arith.constant 0 : i32
    return %c0_i32, %c0_i32_0 : i32, i32
  }
  func.func @transform_6(%arg0: i32) -> (i32, i32) {
    %c0_i32 = arith.constant 0 : i32
    %c0_i32_0 = arith.constant 0 : i32
    %c0_i32_1 = arith.constant 0 : i32
    return %c0_i32, %c0_i32_0 : i32, i32
  }
  func.func @transform_7(%arg0: i32) -> (i32, i32) {
    %c0_i32 = arith.constant 0 : i32
    %c0_i32_0 = arith.constant 0 : i32
    %c0_i32_1 = arith.constant 0 : i32
    return %c0_i32, %c0_i32_0 : i32, i32
  }
  func.func @transform_8(%arg0: i32) -> (i32, i32) {
    %c0_i32 = arith.constant 0 : i32
    %c0_i32_0 = arith.constant 0 : i32
    %c0_i32_1 = arith.constant 0 : i32
    return %c0_i32, %c0_i32_0 : i32, i32
  }
  func.func @transform_9(%arg0: i32) -> (i32, i32) {
    %c0_i32 = arith.constant 0 : i32
    %c0_i32_0 = arith.constant 0 : i32
    %c0_i32_1 = arith.constant 0 : i32
    return %c0_i32, %c0_i32_0 : i32, i32
  }
  func.func @transform_10(%arg0: i32) -> (i32, i32) {
    %c0_i32 = arith.constant 0 : i32
    %c0_i32_0 = arith.constant 0 : i32
    return %arg0, %c0_i32 : i32, i32
  }
}

</mosaic_0001>

<llo_original>
// kernel: lstm_homo_gnn_forward.1
$region0: #{lstm_homo_gnn_forward.1}
  #allocation0 [shape = 'u32[]', space=smem, size = 0x4, offset = 0x4, fixed_abs, tag = 'smem constant byte address 0x4 - core index']
  #allocation1 [shape = 'u32[72,128]{1,0:T(1,128)}', space=vmem, size = 0x9000, scoped, tag = 'internal scratch']
  %s0 = inlined_call_operand.vmem [shape: bf16[16,32], index: 0, kind: input, shape index: {}]
  %s1 = inlined_call_operand.vmem [shape: bf16[16,32], index: 1, kind: input, shape index: {}]
  %s2 = inlined_call_operand.vmem [shape: f32[16,32], index: 2, kind: input, shape index: {}]
  %s3 = inlined_call_operand.vmem [shape: bf16[32,128], index: 3, kind: input, shape index: {}]
  %s4 = inlined_call_operand.vmem [shape: bf16[32,128], index: 4, kind: input, shape index: {}]
  %s5 = inlined_call_operand.vmem [shape: f32[1,128], index: 5, kind: input, shape index: {}]
  %s6 = inlined_call_operand.vmem [shape: bf16[32,128], index: 6, kind: input, shape index: {}]
  %s7 = inlined_call_operand.vmem [shape: f32[1,128], index: 7, kind: input, shape index: {}]
  %s8 = inlined_call_operand.vmem [shape: bf16[128,64], index: 8, kind: input, shape index: {}]
  %s9 = inlined_call_operand.vmem [shape: f32[1,64], index: 9, kind: input, shape index: {}]
  %s10 = inlined_call_operand.vmem [shape: f32[16,128], index: 10, kind: output, shape index: {}]
  %s11 = sld [smem:[#allocation0]]
  $region50: #{lstm_homo_gnn_forward.1} parent=0
    _
  %s13 = ssub.s32 1, %s11
  %s14 = scalar_select 0, %s13, %s11
  // Predicated region
  $region2: #{lstm_homo_gnn_forward.1} parent=0 // pred_check
    _
  $region3: #{lstm_homo_gnn_forward.1} parent=0 // pred_check_branch
    %16 = sbr.rel (0) target = $region5
  $region4: #{lstm_homo_gnn_forward.1} parent=0 // pred_region
    _
  $region5: #{lstm_homo_gnn_forward.1} parent=0 // pred_fallthru
    _
  // Predicated region
  $region6: #{lstm_homo_gnn_forward.1} parent=0 // pred_check
    _
  $region7: #{lstm_homo_gnn_forward.1} parent=0 // pred_check_branch
    %18 = sbr.rel (0) target = $region9
  $region8: #{lstm_homo_gnn_forward.1} parent=0 // pred_region
    _
  $region9: #{lstm_homo_gnn_forward.1} parent=0 // pred_fallthru
    _
  // Predicated region
  $region10: #{lstm_homo_gnn_forward.1} parent=0 // pred_check
    _
  $region11: #{lstm_homo_gnn_forward.1} parent=0 // pred_check_branch
    %20 = sbr.rel (0) target = $region13
  $region12: #{lstm_homo_gnn_forward.1} parent=0 // pred_region
    _
  $region13: #{lstm_homo_gnn_forward.1} parent=0 // pred_fallthru
    _
  // Predicated region
  $region14: #{lstm_homo_gnn_forward.1} parent=0 // pred_check
    _
  $region15: #{lstm_homo_gnn_forward.1} parent=0 // pred_check_branch
    %22 = sbr.rel (0) target = $region17
  $region16: #{lstm_homo_gnn_forward.1} parent=0 // pred_region
    _
  $region17: #{lstm_homo_gnn_forward.1} parent=0 // pred_fallthru
    _
  // Predicated region
  $region18: #{lstm_homo_gnn_forward.1} parent=0 // pred_check
    _
  $region19: #{lstm_homo_gnn_forward.1} parent=0 // pred_check_branch
    %24 = sbr.rel (0) target = $region21
  $region20: #{lstm_homo_gnn_forward.1} parent=0 // pred_region
    _
  $region21: #{lstm_homo_gnn_forward.1} parent=0 // pred_fallthru
    _
  // Predicated region
  $region22: #{lstm_homo_gnn_forward.1} parent=0 // pred_check
    _
  $region23: #{lstm_homo_gnn_forward.1} parent=0 // pred_check_branch
    %26 = sbr.rel (0) target = $region25
  $region24: #{lstm_homo_gnn_forward.1} parent=0 // pred_region
    _
  $region25: #{lstm_homo_gnn_forward.1} parent=0 // pred_fallthru
    _
  // Predicated region
  $region26: #{lstm_homo_gnn_forward.1} parent=0 // pred_check
    _
  $region27: #{lstm_homo_gnn_forward.1} parent=0 // pred_check_branch
    %28 = sbr.rel (0) target = $region29
  $region28: #{lstm_homo_gnn_forward.1} parent=0 // pred_region
    _
  $region29: #{lstm_homo_gnn_forward.1} parent=0 // pred_fallthru
    _
  // Predicated region
  $region30: #{lstm_homo_gnn_forward.1} parent=0 // pred_check
    _
  $region31: #{lstm_homo_gnn_forward.1} parent=0 // pred_check_branch
    %30 = sbr.rel (0) target = $region33
  $region32: #{lstm_homo_gnn_forward.1} parent=0 // pred_region
    _
  $region33: #{lstm_homo_gnn_forward.1} parent=0 // pred_fallthru
    _
  // Predicated region
  $region34: #{lstm_homo_gnn_forward.1} parent=0 // pred_check
    _
  $region35: #{lstm_homo_gnn_forward.1} parent=0 // pred_check_branch
    %32 = sbr.rel (0) target = $region37
  $region36: #{lstm_homo_gnn_forward.1} parent=0 // pred_region
    _
  $region37: #{lstm_homo_gnn_forward.1} parent=0 // pred_fallthru
    _
  // Predicated region
  $region38: #{lstm_homo_gnn_forward.1} parent=0 // pred_check
    _
  $region39: #{lstm_homo_gnn_forward.1} parent=0 // pred_check_branch
    %34 = sbr.rel (0) target = $region41
  $region40: #{lstm_homo_gnn_forward.1} parent=0 // pred_region
    _
  $region41: #{lstm_homo_gnn_forward.1} parent=0 // pred_fallthru
    _
  %v36 = vld [vmem:[%s0] sm:$0xf]
  %v37 = vld [vmem:[%s0 + $0x4] sm:$0xf]
  %v38 = vld [vmem:[%s3] sm:$0xf]
  %v39 = vld [vmem:[%s3 + $0x4] sm:$0xf]
  %v40 = vld [vmem:[%s3 + $0x8] sm:$0xf]
  %v41 = vld [vmem:[%s3 + $0xc] sm:$0xf]
  %v42 = vld [vmem:[%s1] sm:$0xf]
  %v43 = vld [vmem:[%s1 + $0x4] sm:$0xf]
  %v44 = vld [vmem:[%s4] sm:$0xf]
  %v45 = vld [vmem:[%s4 + $0x4] sm:$0xf]
  %v46 = vld [vmem:[%s4 + $0x8] sm:$0xf]
  %v47 = vld [vmem:[%s4 + $0xc] sm:$0xf]
  %v50 = vunpack.c.l.b16 %v42
  %v51 = vunpack.c.l.b16 %v43
  %v52 = vpack.c.b16 %v51, %v50
  %v57 = vunpack.c.l.b16 %v44
  %v58 = vunpack.c.l.b16 %v45
  %v59 = vunpack.c.l.b16 %v46
  %v60 = vunpack.c.l.b16 %v47
  %v61 = vpack.c.b16 %v58, %v57
  %v62 = vpack.c.b16 %v60, %v59
  %vm65 = vcmask 261120
  %v67 = vsel %vm65, %v52, 0
  %69 = vmatpush.bf16.msra.mxu0 0
  %70 = vmatpush.bf16.msra.mxu0 0
  %71 = vmatpush.bf16.msra.mxu0 0
  %72 = vmatpush.bf16.msra.mxu0 0
  %73 = vmatpush.bf16.msra.mxu0 0
  %74 = vmatpush.bf16.msra.mxu0 0
  %75 = vmatpush.bf16.msra.mxu0 %v62
  %76 = vmatpush.bf16.msra.mxu0 %v61
  %77 = vmatmul.bf16.gmra.mxu0 %v67
  %v78 = vpop.f32.mrf.mxu0
  %v79 = vadd.f32 0.0, %v78
  %v80 = vpop.f32.mrf.mxu0
  %v81 = vadd.f32 0.0, %v80
  %82 = vdwg.mxu0
  %v85 = vunpack.c.l.b16 %v36
  %v86 = vunpack.c.l.b16 %v37
  %v87 = vpack.c.b16 %v86, %v85
  %v92 = vunpack.c.l.b16 %v38
  %v93 = vunpack.c.l.b16 %v39
  %v94 = vunpack.c.l.b16 %v40
  %v95 = vunpack.c.l.b16 %v41
  %v96 = vpack.c.b16 %v93, %v92
  %v97 = vpack.c.b16 %v95, %v94
  %v101 = vsel %vm65, %v87, 0
  %103 = vmatpush.bf16.msra.mxu0 0
  %104 = vmatpush.bf16.msra.mxu0 0
  %105 = vmatpush.bf16.msra.mxu0 0
  %106 = vmatpush.bf16.msra.mxu0 0
  %107 = vmatpush.bf16.msra.mxu0 0
  %108 = vmatpush.bf16.msra.mxu0 0
  %109 = vmatpush.bf16.msra.mxu0 %v97
  %110 = vmatpush.bf16.msra.mxu0 %v96
  %111 = vmatmul.bf16.gmra.mxu0 %v101
  %v112 = vpop.f32.mrf.mxu0
  %v113 = vadd.f32 %v79, %v112
  %v114 = vpop.f32.mrf.mxu0
  %v115 = vadd.f32 %v81, %v114
  %116 = vdwg.mxu0
  %v117 = vld [vmem:[%s5] sm:$0x1]
  %v119 = vperm.slane %v117, 0
  %v121 = vadd.f32 %v113, %v119
  %v122 = vadd.f32 %v115, %v119
  %v123 = vxor.u32 %v121, 2147483648
  %v124 = vxor.u32 %v122, 2147483648
  %v125 = vmul.f32 %v123, 1.442695
  %v126 = vpow.pop %v125
  %v127 = vmul.f32 %v124, 1.442695
  %v128 = vpow.pop %v127
  %v129 = vadd.f32 %v126, 1.0
  %v130 = vadd.f32 %v128, 1.0
  %v131 = vrcp.pop %v129
  %v132 = vmul.f32 %v129, %v131
  %v133 = vsub.f32 1.0, %v132
  %v134 = vmul.f32 %v131, %v133
  %v135 = vadd.f32 %v131, %v134
  %vm136 = vweird.f32 %v129
  %vm137 = vweird.f32 %v131
  %vm138 = vmor %vm136, %vm137
  %v139 = vsel %vm138, %v131, %v135
  %v140 = vand.u32 2147483647, %v129
  %vm141 = vcmp.eq.f32.partialorder %v140, 8.507059e+37
  %v142 = vand.u32 %v129, 2147483648
  %v143 = vor.u32 1.1754944e-38, %v142
  %v144 = vsel %vm141, %v143, %v139
  %v145 = vmul.f32 1.0, %v144
  %v146 = vrcp.pop %v130
  %v147 = vmul.f32 %v130, %v146
  %v148 = vsub.f32 1.0, %v147
  %v149 = vmul.f32 %v146, %v148
  %v150 = vadd.f32 %v146, %v149
  %vm151 = vweird.f32 %v130
  %vm152 = vweird.f32 %v146
  %vm153 = vmor %vm151, %vm152
  %v154 = vsel %vm153, %v146, %v150
  %v155 = vand.u32 2147483647, %v130
  %vm156 = vcmp.eq.f32.partialorder %v155, 8.507059e+37
  %v157 = vand.u32 %v130, 2147483648
  %v158 = vor.u32 1.1754944e-38, %v157
  %v159 = vsel %vm156, %v158, %v154
  %v160 = vmul.f32 1.0, %v159
  %v161 = vtanh.pop %v121
  %v162 = vtanh.pop %v122
  %v163 = vld [vmem:[%s2] sm:$0xff]
  %v164 = vld [vmem:[%s2 + $0x8] sm:$0xff]
  %167 = vrot.lane.b32.xlu0 %v163, 32
  %v168 = vpop.permute.xlu0 %167
  %169 = vrot.lane.b32.xlu0 %v164, 32
  %v170 = vpop.permute.xlu0 %169
  %v173 = vmul.f32 %v145, %v168
  %v174 = vmul.f32 %v160, %v170
  %177 = vrot.lane.b32.xlu0 %v161, 32
  %v178 = vpop.permute.xlu0 %177
  %179 = vrot.lane.b32.xlu0 %v162, 32
  %v180 = vpop.permute.xlu0 %179
  %v183 = vmul.f32 %v145, %v178
  %v184 = vmul.f32 %v160, %v180
  %187 = vrot.lane.b32.xlu0 %v183, 32
  %v188 = vpop.permute.xlu0 %187
  %189 = vrot.lane.b32.xlu0 %v184, 32
  %v190 = vpop.permute.xlu0 %189
  %v193 = vadd.f32 %v173, %v188
  %v194 = vadd.f32 %v174, %v190
  %v195 = vtanh.pop %v193
  %v196 = vtanh.pop %v194
  %199 = vrot.lane.b32.xlu0 %v195, 32
  %v200 = vpop.permute.xlu0 %199
  %201 = vrot.lane.b32.xlu0 %v196, 32
  %v202 = vpop.permute.xlu0 %201
  %v205 = vmul.f32 %v145, %v200
  %v206 = vmul.f32 %v160, %v202
  %v207 = vpack.c.bf16 %v206, %v205
  %v208 = vld [vmem:[%s6] sm:$0xf]
  %v209 = vld [vmem:[%s6 + $0x4] sm:$0xf]
  %v210 = vld [vmem:[%s6 + $0x8] sm:$0xf]
  %v211 = vld [vmem:[%s6 + $0xc] sm:$0xf]
  %v212 = vld [vmem:[%s7] sm:$0x1]
  %v214 = vperm.slane %v212, 0
  %217 = vrot.lane.b32.xlu0 %v207, 64
  %v218 = vpop.permute.xlu0 %217
  %v223 = vunpack.c.l.b16 %v208
  %v224 = vunpack.c.l.b16 %v209
  %v225 = vunpack.c.l.b16 %v210
  %v226 = vunpack.c.l.b16 %v211
  %v227 = vpack.c.b16 %v224, %v223
  %v228 = vpack.c.b16 %v226, %v225
  %v232 = vsel %vm65, %v218, 0
  %234 = vmatpush.bf16.msra.mxu0 0
  %235 = vmatpush.bf16.msra.mxu0 0
  %236 = vmatpush.bf16.msra.mxu0 0
  %237 = vmatpush.bf16.msra.mxu0 0
  %238 = vmatpush.bf16.msra.mxu0 0
  %239 = vmatpush.bf16.msra.mxu0 0
  %240 = vmatpush.bf16.msra.mxu0 %v228
  %241 = vmatpush.bf16.msra.mxu0 %v227
  %242 = vmatmul.bf16.gmra.mxu0 %v232
  %v243 = vpop.f32.mrf.mxu0
  %v244 = vadd.f32 %v214, %v243
  %v245 = vpop.f32.mrf.mxu0
  %v246 = vadd.f32 %v214, %v245
  %247 = vdwg.mxu0
  %vm248 = vcmp.gt.f32.partialorder %v244, 0.0
  %vm249 = vcmp.gt.f32.partialorder %v246, 0.0
  %v250 = vmul.f32 %v244, 0.01
  %v251 = vmul.f32 %v246, 0.01
  %v252 = vsel %vm248, %v244, %v250
  %v253 = vsel %vm249, %v246, %v251
  %v254 = vpack.c.bf16 %v253, %v252
  %v255 = vld [vmem:[%s8] sm:$0xf]
  %v256 = vld [vmem:[%s8 + $0x4] sm:$0xf]
  %v257 = vld [vmem:[%s8 + $0x8] sm:$0xf]
  %v258 = vld [vmem:[%s8 + $0xc] sm:$0xf]
  %v259 = vld [vmem:[%s8 + $0x10] sm:$0xf]
  %v260 = vld [vmem:[%s8 + $0x14] sm:$0xf]
  %v261 = vld [vmem:[%s8 + $0x18] sm:$0xf]
  %v262 = vld [vmem:[%s8 + $0x1c] sm:$0xf]
  %v263 = vld [vmem:[%s8 + $0x20] sm:$0xf]
  %v264 = vld [vmem:[%s8 + $0x24] sm:$0xf]
  %v265 = vld [vmem:[%s8 + $0x28] sm:$0xf]
  %v266 = vld [vmem:[%s8 + $0x2c] sm:$0xf]
  %v267 = vld [vmem:[%s8 + $0x30] sm:$0xf]
  %v268 = vld [vmem:[%s8 + $0x34] sm:$0xf]
  %v269 = vld [vmem:[%s8 + $0x38] sm:$0xf]
  %v270 = vld [vmem:[%s8 + $0x3c] sm:$0xf]
  %v271 = vld [vmem:[%s9] sm:$0x1]
  %v273 = vperm.slane %v271, 0
  %v291 = vunpack.c.l.b16 %v255
  %v292 = vunpack.c.l.b16 %v256
  %v293 = vunpack.c.l.b16 %v257
  %v294 = vunpack.c.l.b16 %v258
  %v295 = vunpack.c.l.b16 %v259
  %v296 = vunpack.c.l.b16 %v260
  %v297 = vunpack.c.l.b16 %v261
  %v298 = vunpack.c.l.b16 %v262
  %v299 = vunpack.c.l.b16 %v263
  %v300 = vunpack.c.l.b16 %v264
  %v301 = vunpack.c.l.b16 %v265
  %v302 = vunpack.c.l.b16 %v266
  %v303 = vunpack.c.l.b16 %v267
  %v304 = vunpack.c.l.b16 %v268
  %v305 = vunpack.c.l.b16 %v269
  %v306 = vunpack.c.l.b16 %v270
  %v307 = vpack.c.b16 %v292, %v291
  %v308 = vpack.c.b16 %v294, %v293
  %v309 = vpack.c.b16 %v296, %v295
  %v310 = vpack.c.b16 %v298, %v297
  %v311 = vpack.c.b16 %v300, %v299
  %v312 = vpack.c.b16 %v302, %v301
  %v313 = vpack.c.b16 %v304, %v303
  %v314 = vpack.c.b16 %v306, %v305
  %323 = vmatpush.bf16.msra.mxu0 %v314
  %324 = vmatpush.bf16.msra.mxu0 %v313
  %325 = vmatpush.bf16.msra.mxu0 %v312
  %326 = vmatpush.bf16.msra.mxu0 %v311
  %327 = vmatpush.bf16.msra.mxu0 %v310
  %328 = vmatpush.bf16.msra.mxu0 %v309
  %329 = vmatpush.bf16.msra.mxu0 %v308
  %330 = vmatpush.bf16.msra.mxu0 %v307
  %331 = vmatmul.bf16.gmra.mxu0 %v254
  %v332 = vpop.f32.mrf.mxu0
  %v333 = vadd.f32 %v273, %v332
  %v334 = vpop.f32.mrf.mxu0
  %v335 = vadd.f32 %v273, %v334
  %336 = vdwg.mxu0
  %339 = vrot.lane.b32.xlu0 %v205, 64
  %v340 = vpop.permute.xlu0 %339
  %341 = vrot.lane.b32.xlu0 %v206, 64
  %v342 = vpop.permute.xlu0 %341
  %347 = vrot.lane.b32.xlu0 %v333, 64
  %v348 = vpop.permute.xlu0 %347
  %349 = vrot.lane.b32.xlu0 %v335, 64
  %v350 = vpop.permute.xlu0 %349
  %v353 = vsel %vm65, %v340, %v193
  %v354 = vsel %vm65, %v342, %v194
  %vm355 = vcmask 523264
  %v356 = vsel %vm355, %v353, %v348
  %v357 = vsel %vm355, %v354, %v350
  %358 = vst [vmem:[%s10] sm:$0xff] %v356
  %359 = vst [vmem:[%s10 + $0x8] sm:$0xff] %v357
  // Predicated region
  $region42: #{lstm_homo_gnn_forward.1} parent=0 // pred_check
    _
  $region43: #{lstm_homo_gnn_forward.1} parent=0 // pred_check_branch
    %361 = sbr.rel (0) target = $region45
  $region44: #{lstm_homo_gnn_forward.1} parent=0 // pred_region
    _
  $region45: #{lstm_homo_gnn_forward.1} parent=0 // pred_fallthru
    _
  // Predicated region
  $region46: #{lstm_homo_gnn_forward.1} parent=0 // pred_check
    _
  $region47: #{lstm_homo_gnn_forward.1} parent=0 // pred_check_branch
    %363 = sbr.rel (0) target = $region49
  $region48: #{lstm_homo_gnn_forward.1} parent=0 // pred_region
    _
  $region49: #{lstm_homo_gnn_forward.1} parent=0 // pred_fallthru
    _

</llo_original>
